<compile_context>
chip_gen: v5e
topology: v5e:2x2
jax: 0.10.0
libtpu: 0.0.40
codegen_flags: <defaults>
</compile_context>

<pallas_src>
import functools

import jax
import jax.numpy as jnp
from jax import lax
from jax.experimental import pallas as pl
from jax.experimental.pallas import tpu as pltpu

BN_EPS = 1e-5


def _round_up(x, m):
    return ((x + m - 1) // m) * m


def _batchnorm(x32, gamma, beta):
    """Training-mode BatchNorm1d with the affine folded into scale/shift.

    x32: (B, N) f32;  gamma/beta: (1, N) f32.
    """
    mean = jnp.mean(x32, axis=0, keepdims=True)                  # (1, N)
    mean_sq = jnp.mean(x32 * x32, axis=0, keepdims=True)         # (1, N)
    var = jnp.maximum(mean_sq - mean * mean, 0.0)                # biased var
    scale = lax.rsqrt(var + BN_EPS) * gamma                      # (1, N)
    shift = beta - mean * scale                                  # (1, N)
    return x32 * scale + shift                                   # 1 mul + 1 add


def _actor_kernel(x_ref, vec_ref, w1_ref, w2_ref, w3_ref, out_ref,
                  *, S, F1, F2, A_pad):
    # Unpack the small per-feature vectors (static slices, zero runtime cost).
    g0 = vec_ref[0:1, :S]
    b0 = vec_ref[1:2, :S]
    g1 = vec_ref[2:3, :F1]
    b1 = vec_ref[3:4, :F1]
    g2 = vec_ref[4:5, :F2]
    b2 = vec_ref[5:6, :F2]
    b3 = vec_ref[6:7, :A_pad]

    x = x_ref[...].astype(jnp.float32)

    # bn0 -> fc1 (bf16 MXU, f32 accumulate) -> relu
    h = _batchnorm(x, g0, b0)
    h = jnp.maximum(
        jnp.dot(h.astype(jnp.bfloat16), w1_ref[...],
                preferred_element_type=jnp.float32), 0.0)

    # bn1 -> fc2 -> relu
    h = _batchnorm(h, g1, b1)
    h = jnp.maximum(
        jnp.dot(h.astype(jnp.bfloat16), w2_ref[...],
                preferred_element_type=jnp.float32), 0.0)

    # bn2 -> fc3 (+bias) -> tanh (f32 on the EUP)
    h = _batchnorm(h, g2, b2)
    h = jnp.dot(h.astype(jnp.bfloat16), w3_ref[...],
                preferred_element_type=jnp.float32) + b3
    out_ref[...] = jnp.tanh(h).astype(out_ref.dtype)


def actor_forward(state, params):
    """state: [B, state_size] f32 -> action: [B, action_size] f32 in (-1, 1)."""
    B, S = state.shape
    F1 = params["w1"].shape[1]
    F2 = params["w2"].shape[1]
    A = params["w3"].shape[1]

    # Lane-dense action head: pad the fc3 output width to a multiple of 128.
    A_pad = _round_up(A, 128)
    # Packed small-vector operand: 8 sublanes x P lanes (P multiple of 128).
    P = _round_up(max(S, F1, F2, A_pad), 128)

    def _row(v, n):
        return jnp.pad(v.reshape(1, -1).astype(jnp.float32),
                       ((0, 0), (0, P - n)))

    packed_vecs = jnp.concatenate(
        [
            _row(params["g0"], S), _row(params["b0"], S),
            _row(params["g1"], F1), _row(params["b1"], F1),
            _row(params["g2"], F2), _row(params["b2"], F2),
            _row(jnp.pad(params["b3"].reshape(1, -1), ((0, 0), (0, A_pad - A))),
                 A_pad),
            jnp.zeros((1, P), jnp.float32),
        ],
        axis=0,
    )  # (8, P) f32

    # bf16 weights for the MXU (accumulation stays f32 in-kernel).
    w1 = params["w1"].astype(jnp.bfloat16)                       # (S,  F1)
    w2 = params["w2"].astype(jnp.bfloat16)                       # (F1, F2)
    w3 = jnp.pad(params["w3"], ((0, 0), (0, A_pad - A))).astype(jnp.bfloat16)

    kernel = functools.partial(_actor_kernel, S=S, F1=F1, F2=F2, A_pad=A_pad)

    out_padded = pl.pallas_call(
        kernel,
        out_shape=jax.ShapeDtypeStruct((B, A_pad), jnp.float32),
        grid=(),
        in_specs=[
            pl.BlockSpec((B, S), lambda: (0, 0)),        # state
            pl.BlockSpec((8, P), lambda: (0, 0)),        # packed BN/bias vecs
            pl.BlockSpec((S, F1), lambda: (0, 0)),       # w1 (bf16)
            pl.BlockSpec((F1, F2), lambda: (0, 0)),      # w2 (bf16)
            pl.BlockSpec((F2, A_pad), lambda: (0, 0)),   # w3 (bf16, padded)
        ],
        out_specs=pl.BlockSpec((B, A_pad), lambda: (0, 0)),
    )(state, packed_vecs, w1, w2, w3)

    return out_padded[:, :A]


def init_actor_params(key, state_size, fc1_units, fc2_units, action_size):
    """Deterministic init matching the PyTorch reset_parameters() scheme
    (Lillicrap et al. fan-in uniform; fc3 weight in [-0.003, 0.003]; fc3 bias
    keeps the default nn.Linear fan-in init).  Weights are stored transposed:
    [in_features, out_features], in f32 (cast to bf16 at call time)."""
    k1, k2, k3, k4 = jax.random.split(key, 4)

    lim1 = 1.0 / jnp.sqrt(jnp.float32(state_size))
    lim2 = 1.0 / jnp.sqrt(jnp.float32(fc1_units))
    lim3 = 1.0 / jnp.sqrt(jnp.float32(fc2_units))

    return {
        # BatchNorm affine params at their nn.BatchNorm1d defaults.
        "g0": jnp.ones((1, state_size), jnp.float32),
        "b0": jnp.zeros((1, state_size), jnp.float32),
        "g1": jnp.ones((1, fc1_units), jnp.float32),
        "b1": jnp.zeros((1, fc1_units), jnp.float32),
        "g2": jnp.ones((1, fc2_units), jnp.float32),
        "b2": jnp.zeros((1, fc2_units), jnp.float32),
        # Linear weights (transposed to [in, out]).
        "w1": jax.random.uniform(k1, (state_size, fc1_units), jnp.float32,
                                 -lim1, lim1),
        "w2": jax.random.uniform(k2, (fc1_units, fc2_units), jnp.float32,
                                 -lim2, lim2),
        "w3": jax.random.uniform(k3, (fc2_units, action_size), jnp.float32,
                                 -3 * 0.001, 0.003),
        "b3": jax.random.uniform(k4, (1, action_size), jnp.float32,
                                 -lim3, lim3),
    }


if __name__ == "__main__":
    key = jax.random.PRNGKey(0)
    k_state, k_params = jax.random.split(key)

    batch = 8
    state_size = 16
    fc1_units = 32
    fc2_units = 32
    action_size = 4

    state = jax.random.normal(k_state, (batch, state_size), jnp.float32)
    params = init_actor_params(k_params, state_size, fc1_units, fc2_units,
                               action_size)

    action = actor_forward(state, params)
    jax.block_until_ready(action)

    assert action.shape == (batch, action_size)
    assert bool(jnp.all(jnp.abs(action) <= 1.0))
    assert bool(jnp.all(jnp.isfinite(action)))
    print("KERNEL_OK")
</pallas_src>

<mosaic_0001>
module attributes {stable_mosaic.version = 11 : i64} {
  func.func @_actor_kernel(%arg0: memref<8x16xf32, #tpu.memory_space<vmem>>, %arg1: memref<8x128xf32, #tpu.memory_space<vmem>>, %arg2: memref<16x32xbf16, #tpu.memory_space<vmem>>, %arg3: memref<32x32xbf16, #tpu.memory_space<vmem>>, %arg4: memref<32x128xbf16, #tpu.memory_space<vmem>>, %arg5: memref<8x128xf32, #tpu.memory_space<vmem>>) attributes {dimension_semantics = [], scalar_prefetch = 0 : i64, scratch_operands = 0 : i64, tpu.core_type = #tpu.core_type<tc>} {
    %c0 = arith.constant 0 : index
    %c0_0 = arith.constant 0 : index
    %0 = vector.load %arg1[%c0, %c0_0] : memref<8x128xf32, #tpu.memory_space<vmem>>, vector<1x16xf32>
    %c1 = arith.constant 1 : index
    %c0_1 = arith.constant 0 : index
    %1 = vector.load %arg1[%c1, %c0_1] : memref<8x128xf32, #tpu.memory_space<vmem>>, vector<1x16xf32>
    %c2 = arith.constant 2 : index
    %c0_2 = arith.constant 0 : index
    %2 = vector.load %arg1[%c2, %c0_2] : memref<8x128xf32, #tpu.memory_space<vmem>>, vector<1x32xf32>
    %c3 = arith.constant 3 : index
    %c0_3 = arith.constant 0 : index
    %3 = vector.load %arg1[%c3, %c0_3] : memref<8x128xf32, #tpu.memory_space<vmem>>, vector<1x32xf32>
    %c4 = arith.constant 4 : index
    %c0_4 = arith.constant 0 : index
    %4 = vector.load %arg1[%c4, %c0_4] : memref<8x128xf32, #tpu.memory_space<vmem>>, vector<1x32xf32>
    %c5 = arith.constant 5 : index
    %c0_5 = arith.constant 0 : index
    %5 = vector.load %arg1[%c5, %c0_5] : memref<8x128xf32, #tpu.memory_space<vmem>>, vector<1x32xf32>
    %c6 = arith.constant 6 : index
    %c0_6 = arith.constant 0 : index
    %6 = vector.load %arg1[%c6, %c0_6] : memref<8x128xf32, #tpu.memory_space<vmem>>, vector<1x128xf32>
    %c0_7 = arith.constant 0 : index
    %c0_8 = arith.constant 0 : index
    %7 = vector.load %arg0[%c0_7, %c0_8] : memref<8x16xf32, #tpu.memory_space<vmem>>, vector<8x16xf32>
    %cst = arith.constant dense<0.000000e+00> : vector<16xf32>
    %8 = vector.multi_reduction <add>, %7, %cst [0] : vector<8x16xf32> to vector<16xf32>
    %9 = vector.shape_cast %8 : vector<16xf32> to vector<1x16xf32>
    %cst_9 = arith.constant 8.000000e+00 : f32
    %10 = vector.broadcast %cst_9 : f32 to vector<1x16xf32>
    %11 = arith.divf %9, %10 : vector<1x16xf32>
    %12 = arith.mulf %7, %7 : vector<8x16xf32>
    %cst_10 = arith.constant dense<0.000000e+00> : vector<16xf32>
    %13 = vector.multi_reduction <add>, %12, %cst_10 [0] : vector<8x16xf32> to vector<16xf32>
    %14 = vector.shape_cast %13 : vector<16xf32> to vector<1x16xf32>
    %cst_11 = arith.constant 8.000000e+00 : f32
    %15 = vector.broadcast %cst_11 : f32 to vector<1x16xf32>
    %16 = arith.divf %14, %15 : vector<1x16xf32>
    %17 = arith.mulf %11, %11 : vector<1x16xf32>
    %18 = arith.subf %16, %17 : vector<1x16xf32>
    %cst_12 = arith.constant 0.000000e+00 : f32
    %19 = vector.broadcast %cst_12 : f32 to vector<1x16xf32>
    %20 = arith.maximumf %18, %19 : vector<1x16xf32>
    %cst_13 = arith.constant 9.99999974E-6 : f32
    %21 = vector.broadcast %cst_13 : f32 to vector<1x16xf32>
    %22 = arith.addf %20, %21 : vector<1x16xf32>
    %23 = math.rsqrt %22 : vector<1x16xf32>
    %24 = arith.mulf %23, %0 : vector<1x16xf32>
    %25 = arith.mulf %11, %24 : vector<1x16xf32>
    %26 = arith.subf %1, %25 : vector<1x16xf32>
    %27 = vector.broadcast %24 : vector<1x16xf32> to vector<8x16xf32>
    %28 = arith.mulf %7, %27 : vector<8x16xf32>
    %29 = vector.broadcast %26 : vector<1x16xf32> to vector<8x16xf32>
    %30 = arith.addf %28, %29 : vector<8x16xf32>
    %31 = arith.truncf %30 : vector<8x16xf32> to vector<8x16xbf16>
    %c0_14 = arith.constant 0 : index
    %c0_15 = arith.constant 0 : index
    %32 = vector.load %arg2[%c0_14, %c0_15] : memref<16x32xbf16, #tpu.memory_space<vmem>>, vector<16x32xbf16>
    %cst_16 = arith.constant dense<0.000000e+00> : vector<8x32xf32>
    %33 = tpu.matmul %31, %32, %cst_16 {dimension_numbers = #tpu.dot_dimension_numbers<[1], [0], [0], [1], [0, 0, 1, 1], [], []>} : vector<8x16xbf16>, vector<16x32xbf16>, vector<8x32xf32> -> vector<8x32xf32>
    %cst_17 = arith.constant 0.000000e+00 : f32
    %34 = vector.broadcast %cst_17 : f32 to vector<8x32xf32>
    %35 = arith.maximumf %33, %34 : vector<8x32xf32>
    %cst_18 = arith.constant dense<0.000000e+00> : vector<32xf32>
    %36 = vector.multi_reduction <add>, %35, %cst_18 [0] : vector<8x32xf32> to vector<32xf32>
    %37 = vector.shape_cast %36 : vector<32xf32> to vector<1x32xf32>
    %cst_19 = arith.constant 8.000000e+00 : f32
    %38 = vector.broadcast %cst_19 : f32 to vector<1x32xf32>
    %39 = arith.divf %37, %38 : vector<1x32xf32>
    %40 = arith.mulf %35, %35 : vector<8x32xf32>
    %cst_20 = arith.constant dense<0.000000e+00> : vector<32xf32>
    %41 = vector.multi_reduction <add>, %40, %cst_20 [0] : vector<8x32xf32> to vector<32xf32>
    %42 = vector.shape_cast %41 : vector<32xf32> to vector<1x32xf32>
    %cst_21 = arith.constant 8.000000e+00 : f32
    %43 = vector.broadcast %cst_21 : f32 to vector<1x32xf32>
    %44 = arith.divf %42, %43 : vector<1x32xf32>
    %45 = arith.mulf %39, %39 : vector<1x32xf32>
    %46 = arith.subf %44, %45 : vector<1x32xf32>
    %cst_22 = arith.constant 0.000000e+00 : f32
    %47 = vector.broadcast %cst_22 : f32 to vector<1x32xf32>
    %48 = arith.maximumf %46, %47 : vector<1x32xf32>
    %cst_23 = arith.constant 9.99999974E-6 : f32
    %49 = vector.broadcast %cst_23 : f32 to vector<1x32xf32>
    %50 = arith.addf %48, %49 : vector<1x32xf32>
    %51 = math.rsqrt %50 : vector<1x32xf32>
    %52 = arith.mulf %51, %2 : vector<1x32xf32>
    %53 = arith.mulf %39, %52 : vector<1x32xf32>
    %54 = arith.subf %3, %53 : vector<1x32xf32>
    %55 = vector.broadcast %52 : vector<1x32xf32> to vector<8x32xf32>
    %56 = arith.mulf %35, %55 : vector<8x32xf32>
    %57 = vector.broadcast %54 : vector<1x32xf32> to vector<8x32xf32>
    %58 = arith.addf %56, %57 : vector<8x32xf32>
    %59 = arith.truncf %58 : vector<8x32xf32> to vector<8x32xbf16>
    %c0_24 = arith.constant 0 : index
    %c0_25 = arith.constant 0 : index
    %60 = vector.load %arg3[%c0_24, %c0_25] : memref<32x32xbf16, #tpu.memory_space<vmem>>, vector<32x32xbf16>
    %cst_26 = arith.constant dense<0.000000e+00> : vector<8x32xf32>
    %61 = tpu.matmul %59, %60, %cst_26 {dimension_numbers = #tpu.dot_dimension_numbers<[1], [0], [0], [1], [0, 0, 1, 1], [], []>} : vector<8x32xbf16>, vector<32x32xbf16>, vector<8x32xf32> -> vector<8x32xf32>
    %cst_27 = arith.constant 0.000000e+00 : f32
    %62 = vector.broadcast %cst_27 : f32 to vector<8x32xf32>
    %63 = arith.maximumf %61, %62 : vector<8x32xf32>
    %cst_28 = arith.constant dense<0.000000e+00> : vector<32xf32>
    %64 = vector.multi_reduction <add>, %63, %cst_28 [0] : vector<8x32xf32> to vector<32xf32>
    %65 = vector.shape_cast %64 : vector<32xf32> to vector<1x32xf32>
    %cst_29 = arith.constant 8.000000e+00 : f32
    %66 = vector.broadcast %cst_29 : f32 to vector<1x32xf32>
    %67 = arith.divf %65, %66 : vector<1x32xf32>
    %68 = arith.mulf %63, %63 : vector<8x32xf32>
    %cst_30 = arith.constant dense<0.000000e+00> : vector<32xf32>
    %69 = vector.multi_reduction <add>, %68, %cst_30 [0] : vector<8x32xf32> to vector<32xf32>
    %70 = vector.shape_cast %69 : vector<32xf32> to vector<1x32xf32>
    %cst_31 = arith.constant 8.000000e+00 : f32
    %71 = vector.broadcast %cst_31 : f32 to vector<1x32xf32>
    %72 = arith.divf %70, %71 : vector<1x32xf32>
    %73 = arith.mulf %67, %67 : vector<1x32xf32>
    %74 = arith.subf %72, %73 : vector<1x32xf32>
    %cst_32 = arith.constant 0.000000e+00 : f32
    %75 = vector.broadcast %cst_32 : f32 to vector<1x32xf32>
    %76 = arith.maximumf %74, %75 : vector<1x32xf32>
    %cst_33 = arith.constant 9.99999974E-6 : f32
    %77 = vector.broadcast %cst_33 : f32 to vector<1x32xf32>
    %78 = arith.addf %76, %77 : vector<1x32xf32>
    %79 = math.rsqrt %78 : vector<1x32xf32>
    %80 = arith.mulf %79, %4 : vector<1x32xf32>
    %81 = arith.mulf %67, %80 : vector<1x32xf32>
    %82 = arith.subf %5, %81 : vector<1x32xf32>
    %83 = vector.broadcast %80 : vector<1x32xf32> to vector<8x32xf32>
    %84 = arith.mulf %63, %83 : vector<8x32xf32>
    %85 = vector.broadcast %82 : vector<1x32xf32> to vector<8x32xf32>
    %86 = arith.addf %84, %85 : vector<8x32xf32>
    %87 = arith.truncf %86 : vector<8x32xf32> to vector<8x32xbf16>
    %c0_34 = arith.constant 0 : index
    %c0_35 = arith.constant 0 : index
    %88 = vector.load %arg4[%c0_34, %c0_35] : memref<32x128xbf16, #tpu.memory_space<vmem>>, vector<32x128xbf16>
    %cst_36 = arith.constant dense<0.000000e+00> : vector<8x128xf32>
    %89 = tpu.matmul %87, %88, %cst_36 {dimension_numbers = #tpu.dot_dimension_numbers<[1], [0], [0], [1], [0, 0, 1, 1], [], []>} : vector<8x32xbf16>, vector<32x128xbf16>, vector<8x128xf32> -> vector<8x128xf32>
    %90 = vector.broadcast %6 : vector<1x128xf32> to vector<8x128xf32>
    %91 = arith.addf %89, %90 : vector<8x128xf32>
    %92 = math.tanh %91 : vector<8x128xf32>
    %c0_37 = arith.constant 0 : index
    %c0_38 = arith.constant 0 : index
    %93 = vector.load %arg5[%c0_37, %c0_38] : memref<8x128xf32, #tpu.memory_space<vmem>>, vector<8x128xf32>
    tpu.vector_store %arg5[%c0_37, %c0_38], %92 {strides = array<i32>} : memref<8x128xf32, #tpu.memory_space<vmem>>, vector<8x128xf32>,
    return
  }
}

</mosaic_0001>

<llo_original>
// kernel: tpu_custom_call.1
$region0: #{tpu_custom_call.1}
  #allocation0 [shape = 'u32[]', space=smem, size = 0x4, offset = 0x4, fixed_abs, tag = 'smem constant byte address 0x4 - core index']
  #allocation1 [shape = 'u32[72,128]{1,0:T(1,128)}', space=vmem, size = 0x9000, scoped, tag = 'internal scratch']
  %s0 = inlined_call_operand.hbm [shape: f32[8,16], index: 0, kind: input, shape index: {}]
  %s1 = inlined_call_operand.hbm [shape: f32[8,128], index: 1, kind: input, shape index: {}]
  %s2 = inlined_call_operand.hbm [shape: bf16[16,32], index: 2, kind: input, shape index: {}]
  %s3 = inlined_call_operand.hbm [shape: bf16[32,32], index: 3, kind: input, shape index: {}]
  %s4 = inlined_call_operand.hbm [shape: bf16[32,128], index: 4, kind: input, shape index: {}]
  %s5 = inlined_call_operand.hbm [shape: f32[8,128], index: 5, kind: output, shape index: {}]
  %s6 = sld [smem:[#allocation0]]
  $region50: #{tpu_custom_call.1} parent=0
    _
  %s8 = ssub.s32 1, %s6
  %s9 = scalar_select 0, %s8, %s6
  $region1: #{tpu_custom_call.1} parent=0
    #allocation2 [shape = 'u8[4096]{0}', space=vmem, size = 0x1000, scoped, tag = 'input window, operand 0, single buffered']
    #allocation3 [shape = 's32[1]{0}', space=sflag, size = 0x4, scoped, tag = 'scoped memory for tpu_custom_call.1']
    #allocation4 [shape = 's32[1]{0}', space=sflag, size = 0x4, scoped, tag = 'scoped memory for tpu_custom_call.1']
    #allocation5 [shape = 'u8[4096]{0}', space=vmem, size = 0x1000, scoped, tag = 'input window, operand 1, single buffered']
    #allocation6 [shape = 's32[1]{0}', space=sflag, size = 0x4, scoped, tag = 'scoped memory for tpu_custom_call.1']
    #allocation7 [shape = 'u8[4096]{0}', space=vmem, size = 0x1000, scoped, tag = 'input window, operand 2, single buffered']
    #allocation8 [shape = 'u8[8192]{0}', space=vmem, size = 0x2000, scoped, tag = 'input window, operand 3, single buffered']
    #allocation9 [shape = 's32[1]{0}', space=sflag, size = 0x4, scoped, tag = 'scoped memory for tpu_custom_call.1']
    #allocation10 [shape = 'u8[8192]{0}', space=vmem, size = 0x2000, scoped, tag = 'input window, operand 4, single buffered']
    #allocation11 [shape = 'u8[4096]{0}', space=vmem, size = 0x1000, scoped, tag = 'output window, operand 0, single buffered']
    %10 = vsyncpa [#allocation3], 0
    %11 = vsyncpa [#allocation6], 0
    %12 = vsyncpa [#allocation9], 0
    %13 = vsyncpa [#allocation4], 0
    // Predicated region
    $region2: #{tpu_custom_call.1} parent=1 // pred_check
      _
    $region3: #{tpu_custom_call.1} parent=1 // pred_check_branch
      %15 = sbr.rel (0) target = $region5
    $region4: #{tpu_custom_call.1} parent=1 // pred_region
      %17 = vsyncadd [#allocation3], 0
      %s19 = sshll.u32 %s0, 4
      %s20 = int_to_ptr.hbm [resolvable:$true] %s19
      %s21 = sshll.u32 [#allocation2], 4
      %s22 = int_to_ptr.vmem [resolvable:$true] %s21
      %24 = dma.hbm_to_vmem [thread:$0]  %s20, 128, %s22, [#allocation3]
    $region5: #{tpu_custom_call.1} parent=1 // pred_fallthru
      _
    // Predicated region
    $region6: #{tpu_custom_call.1} parent=1 // pred_check
      _
    $region7: #{tpu_custom_call.1} parent=1 // pred_check_branch
      %26 = sbr.rel (0) target = $region9
    $region8: #{tpu_custom_call.1} parent=1 // pred_region
      %28 = vsyncadd [#allocation6], 0
      %s30 = sshll.u32 %s1, 4
      %s31 = int_to_ptr.hbm [resolvable:$true] %s30
      %s32 = sshll.u32 [#allocation5], 4
      %s33 = int_to_ptr.vmem [resolvable:$true] %s32
      %35 = dma.hbm_to_vmem [thread:$0]  %s31, 128, %s33, [#allocation6]
    $region9: #{tpu_custom_call.1} parent=1 // pred_fallthru
      _
    // Predicated region
    $region10: #{tpu_custom_call.1} parent=1 // pred_check
      _
    $region11: #{tpu_custom_call.1} parent=1 // pred_check_branch
      %37 = sbr.rel (0) target = $region13
    $region12: #{tpu_custom_call.1} parent=1 // pred_region
      %39 = vsyncadd [#allocation6], 0
      %s40 = sshll.u32 %s2, 4
      %s41 = int_to_ptr.hbm [resolvable:$true] %s40
      %s42 = sshll.u32 [#allocation7], 4
      %s43 = int_to_ptr.vmem [resolvable:$true] %s42
      %48 = dma.hbm_to_vmem [thread:$0]  %s41, 128, %s43, [#allocation6], 64, 64, 4
    $region13: #{tpu_custom_call.1} parent=1 // pred_fallthru
      _
    // Predicated region
    $region14: #{tpu_custom_call.1} parent=1 // pred_check
      _
    $region15: #{tpu_custom_call.1} parent=1 // pred_check_branch
      %50 = sbr.rel (0) target = $region17
    $region16: #{tpu_custom_call.1} parent=1 // pred_region
      %52 = vsyncadd [#allocation9], 0
      %s53 = sshll.u32 %s3, 4
      %s54 = int_to_ptr.hbm [resolvable:$true] %s53
      %s55 = sshll.u32 [#allocation8], 4
      %s56 = int_to_ptr.vmem [resolvable:$true] %s55
      %61 = dma.hbm_to_vmem [thread:$0]  %s54, 256, %s56, [#allocation9], 64, 64, 4
    $region17: #{tpu_custom_call.1} parent=1 // pred_fallthru
      _
    // Predicated region
    $region18: #{tpu_custom_call.1} parent=1 // pred_check
      _
    $region19: #{tpu_custom_call.1} parent=1 // pred_check_branch
      %63 = sbr.rel (0) target = $region21
    $region20: #{tpu_custom_call.1} parent=1 // pred_region
      %65 = vsyncadd [#allocation9], 0
      %s66 = sshll.u32 %s4, 4
      %s67 = int_to_ptr.hbm [resolvable:$true] %s66
      %s68 = sshll.u32 [#allocation10], 4
      %s69 = int_to_ptr.vmem [resolvable:$true] %s68
      %74 = dma.hbm_to_vmem [thread:$0]  %s67, 256, %s69, [#allocation9], 64, 64, 4
    $region21: #{tpu_custom_call.1} parent=1 // pred_fallthru
      _
    // Predicated region
    $region22: #{tpu_custom_call.1} parent=1 // pred_check
      _
    $region23: #{tpu_custom_call.1} parent=1 // pred_check_branch
      %76 = sbr.rel (0) target = $region25
    $region24: #{tpu_custom_call.1} parent=1 // pred_region
      %78 = dma.done [#allocation3], 128
    $region25: #{tpu_custom_call.1} parent=1 // pred_fallthru
      _
    // Predicated region
    $region26: #{tpu_custom_call.1} parent=1 // pred_check
      _
    $region27: #{tpu_custom_call.1} parent=1 // pred_check_branch
      %80 = sbr.rel (0) target = $region29
    $region28: #{tpu_custom_call.1} parent=1 // pred_region
      %82 = dma.done [#allocation6], 128
    $region29: #{tpu_custom_call.1} parent=1 // pred_fallthru
      _
    // Predicated region
    $region30: #{tpu_custom_call.1} parent=1 // pred_check
      _
    $region31: #{tpu_custom_call.1} parent=1 // pred_check_branch
      %84 = sbr.rel (0) target = $region33
    $region32: #{tpu_custom_call.1} parent=1 // pred_region
      %86 = dma.done [#allocation6], 128
    $region33: #{tpu_custom_call.1} parent=1 // pred_fallthru
      _
    // Predicated region
    $region34: #{tpu_custom_call.1} parent=1 // pred_check
      _
    $region35: #{tpu_custom_call.1} parent=1 // pred_check_branch
      %88 = sbr.rel (0) target = $region37
    $region36: #{tpu_custom_call.1} parent=1 // pred_region
      %90 = dma.done [#allocation9], 256
    $region37: #{tpu_custom_call.1} parent=1 // pred_fallthru
      _
    // Predicated region
    $region38: #{tpu_custom_call.1} parent=1 // pred_check
      _
    $region39: #{tpu_custom_call.1} parent=1 // pred_check_branch
      %92 = sbr.rel (0) target = $region41
    $region40: #{tpu_custom_call.1} parent=1 // pred_region
      %94 = dma.done [#allocation9], 256
    $region41: #{tpu_custom_call.1} parent=1 // pred_fallthru
      _
    %v96 = vld [vmem:[#allocation5] sm:$0x1]
    %v97 = vld [vmem:[#allocation5 + $0x1] sm:$0x1]
    %v98 = vld [vmem:[#allocation5 + $0x2] sm:$0x1]
    %v99 = vld [vmem:[#allocation5 + $0x3] sm:$0x1]
    %v100 = vld [vmem:[#allocation5 + $0x4] sm:$0x1]
    %v101 = vld [vmem:[#allocation5 + $0x5] sm:$0x1]
    %v102 = vld [vmem:[#allocation5 + $0x6] sm:$0x1]
    %v103 = vld [vmem:[#allocation2] sm:$0xff]
    %vm104 = vcmask 130048
    %v105 = vsel %vm104, %v103, 0.0
    %v106 = vrot.slane %v105, 4
    %v107 = vadd.f32 %v105, %v106
    %v108 = vrot.slane %v107, 2
    %v109 = vadd.f32 %v107, %v108
    %v110 = vrot.slane %v109, 1
    %v111 = vadd.f32 %v109, %v110
    %v112 = vrcp.pop 8.0
    %v113 = vmul.f32 8.0, %v112
    %v114 = vsub.f32 1.0, %v113
    %v115 = vmul.f32 %v112, %v114
    %v116 = vadd.f32 %v112, %v115
    %vm117 = vweird.f32 %v112
    %v118 = vsel %vm117, %v112, %v116
    %v119 = vmul.f32 %v111, %v118
    %v120 = vmul.f32 %v103, %v103
    %v121 = vsel %vm104, %v120, 0.0
    %v122 = vrot.slane %v121, 4
    %v123 = vadd.f32 %v121, %v122
    %v124 = vrot.slane %v123, 2
    %v125 = vadd.f32 %v123, %v124
    %v126 = vrot.slane %v125, 1
    %v127 = vadd.f32 %v125, %v126
    %v128 = vmul.f32 %v127, %v118
    %v129 = vmul.f32 %v119, %v119
    %v130 = vsub.f32 %v128, %v129
    %v131 = vmax.f32 %v130, 0.0
    %v132 = vadd.f32 %v131, 1e-05
    %v133 = vrsqrt.pop %v132
    %v134 = vmul.f32 %v133, %v132
    %v135 = vmul.f32 %v134, %v133
    %v136 = vmul.f32 0.5, %v135
    %v137 = vsub.f32 1.5, %v136
    %v138 = vmul.f32 %v133, %v137
    %vm139 = vweird.f32 %v132
    %vm140 = vweird.f32 %v133
    %vm141 = vmor %vm139, %vm140
    %v142 = vsel %vm141, %v133, %v138
    %v143 = vmul.f32 %v142, %v96
    %v144 = vmul.f32 %v119, %v143
    %v145 = vsub.f32 %v97, %v144
    %v146 = vperm.slane %v143, 0
    %v147 = vmul.f32 %v103, %v146
    %v148 = vperm.slane %v145, 0
    %v149 = vadd.f32 %v147, %v148
    %v150 = vpack.c.bf16 %v149, %v149
    %v151 = vld [vmem:[#allocation7] sm:$0xf]
    %v152 = vld [vmem:[#allocation7 + $0x4] sm:$0xf]
    %v155 = vunpack.c.l.b16 %v151
    %v156 = vunpack.c.l.b16 %v152
    %v157 = vpack.c.b16 %v156, %v155
    %v160 = vsel %vm104, %v150, 0
    %162 = vmatpush.bf16.msra.mxu0 0
    %163 = vmatpush.bf16.msra.mxu0 0
    %164 = vmatpush.bf16.msra.mxu0 0
    %165 = vmatpush.bf16.msra.mxu0 0
    %166 = vmatpush.bf16.msra.mxu0 0
    %167 = vmatpush.bf16.msra.mxu0 0
    %168 = vmatpush.bf16.msra.mxu0 0
    %169 = vmatpush.bf16.msra.mxu0 %v157
    %170 = vmatmul.bf16.gmra.mxu0 %v160
    %v171 = vpop.f32.mrf.mxu0
    %v172 = vadd.f32 0.0, %v171
    %v173 = vpop.f32.mrf.mxu0
    %174 = vdwg.mxu0
    %v175 = vmax.f32 %v172, 0.0
    %vm176 = vcmask 261120
    %v177 = vsel %vm176, %v175, 0.0
    %v178 = vrot.slane %v177, 4
    %v179 = vadd.f32 %v177, %v178
    %v180 = vrot.slane %v179, 2
    %v181 = vadd.f32 %v179, %v180
    %v182 = vrot.slane %v181, 1
    %v183 = vadd.f32 %v181, %v182
    %v184 = vmul.f32 %v183, %v118
    %v185 = vmul.f32 %v175, %v175
    %v186 = vsel %vm176, %v185, 0.0
    %v187 = vrot.slane %v186, 4
    %v188 = vadd.f32 %v186, %v187
    %v189 = vrot.slane %v188, 2
    %v190 = vadd.f32 %v188, %v189
    %v191 = vrot.slane %v190, 1
    %v192 = vadd.f32 %v190, %v191
    %v193 = vmul.f32 %v192, %v118
    %v194 = vmul.f32 %v184, %v184
    %v195 = vsub.f32 %v193, %v194
    %v196 = vmax.f32 %v195, 0.0
    %v197 = vadd.f32 %v196, 1e-05
    %v198 = vrsqrt.pop %v197
    %v199 = vmul.f32 %v198, %v197
    %v200 = vmul.f32 %v199, %v198
    %v201 = vmul.f32 0.5, %v200
    %v202 = vsub.f32 1.5, %v201
    %v203 = vmul.f32 %v198, %v202
    %vm204 = vweird.f32 %v197
    %vm205 = vweird.f32 %v198
    %vm206 = vmor %vm204, %vm205
    %v207 = vsel %vm206, %v198, %v203
    %v208 = vmul.f32 %v207, %v98
    %v209 = vmul.f32 %v184, %v208
    %v210 = vsub.f32 %v99, %v209
    %v211 = vperm.slane %v208, 0
    %v212 = vmul.f32 %v175, %v211
    %v213 = vperm.slane %v210, 0
    %v214 = vadd.f32 %v212, %v213
    %v215 = vpack.c.bf16 %v214, %v214
    %v216 = vld [vmem:[#allocation8] sm:$0xf]
    %v217 = vld [vmem:[#allocation8 + $0x4] sm:$0xf]
    %v218 = vld [vmem:[#allocation8 + $0x8] sm:$0xf]
    %v219 = vld [vmem:[#allocation8 + $0xc] sm:$0xf]
    %v224 = vunpack.c.l.b16 %v216
    %v225 = vunpack.c.l.b16 %v217
    %v226 = vunpack.c.l.b16 %v218
    %v227 = vunpack.c.l.b16 %v219
    %v228 = vpack.c.b16 %v225, %v224
    %v229 = vpack.c.b16 %v227, %v226
    %v233 = vsel %vm176, %v215, 0
    %235 = vmatpush.bf16.msra.mxu0 0
    %236 = vmatpush.bf16.msra.mxu0 0
    %237 = vmatpush.bf16.msra.mxu0 0
    %238 = vmatpush.bf16.msra.mxu0 0
    %239 = vmatpush.bf16.msra.mxu0 0
    %240 = vmatpush.bf16.msra.mxu0 0
    %241 = vmatpush.bf16.msra.mxu0 %v229
    %242 = vmatpush.bf16.msra.mxu0 %v228
    %243 = vmatmul.bf16.gmra.mxu0 %v233
    %v244 = vpop.f32.mrf.mxu0
    %v245 = vadd.f32 0.0, %v244
    %v246 = vpop.f32.mrf.mxu0
    %247 = vdwg.mxu0
    %v248 = vmax.f32 %v245, 0.0
    %v249 = vsel %vm176, %v248, 0.0
    %v250 = vrot.slane %v249, 4
    %v251 = vadd.f32 %v249, %v250
    %v252 = vrot.slane %v251, 2
    %v253 = vadd.f32 %v251, %v252
    %v254 = vrot.slane %v253, 1
    %v255 = vadd.f32 %v253, %v254
    %v256 = vmul.f32 %v255, %v118
    %v257 = vmul.f32 %v248, %v248
    %v258 = vsel %vm176, %v257, 0.0
    %v259 = vrot.slane %v258, 4
    %v260 = vadd.f32 %v258, %v259
    %v261 = vrot.slane %v260, 2
    %v262 = vadd.f32 %v260, %v261
    %v263 = vrot.slane %v262, 1
    %v264 = vadd.f32 %v262, %v263
    %v265 = vmul.f32 %v264, %v118
    %v266 = vmul.f32 %v256, %v256
    %v267 = vsub.f32 %v265, %v266
    %v268 = vmax.f32 %v267, 0.0
    %v269 = vadd.f32 %v268, 1e-05
    %v270 = vrsqrt.pop %v269
    %v271 = vmul.f32 %v270, %v269
    %v272 = vmul.f32 %v271, %v270
    %v273 = vmul.f32 0.5, %v272
    %v274 = vsub.f32 1.5, %v273
    %v275 = vmul.f32 %v270, %v274
    %vm276 = vweird.f32 %v269
    %vm277 = vweird.f32 %v270
    %vm278 = vmor %vm276, %vm277
    %v279 = vsel %vm278, %v270, %v275
    %v280 = vmul.f32 %v279, %v100
    %v281 = vmul.f32 %v256, %v280
    %v282 = vsub.f32 %v101, %v281
    %v283 = vperm.slane %v280, 0
    %v284 = vmul.f32 %v248, %v283
    %v285 = vperm.slane %v282, 0
    %v286 = vadd.f32 %v284, %v285
    %v287 = vpack.c.bf16 %v286, %v286
    %v288 = vld [vmem:[#allocation10] sm:$0xf]
    %v289 = vld [vmem:[#allocation10 + $0x4] sm:$0xf]
    %v290 = vld [vmem:[#allocation10 + $0x8] sm:$0xf]
    %v291 = vld [vmem:[#allocation10 + $0xc] sm:$0xf]
    %v292 = vperm.slane %v102, 0
    %v297 = vunpack.c.l.b16 %v288
    %v298 = vunpack.c.l.b16 %v289
    %v299 = vunpack.c.l.b16 %v290
    %v300 = vunpack.c.l.b16 %v291
    %v301 = vpack.c.b16 %v298, %v297
    %v302 = vpack.c.b16 %v300, %v299
    %v306 = vsel %vm176, %v287, 0
    %308 = vmatpush.bf16.msra.mxu0 0
    %309 = vmatpush.bf16.msra.mxu0 0
    %310 = vmatpush.bf16.msra.mxu0 0
    %311 = vmatpush.bf16.msra.mxu0 0
    %312 = vmatpush.bf16.msra.mxu0 0
    %313 = vmatpush.bf16.msra.mxu0 0
    %314 = vmatpush.bf16.msra.mxu0 %v302
    %315 = vmatpush.bf16.msra.mxu0 %v301
    %316 = vmatmul.bf16.gmra.mxu0 %v306
    %v317 = vpop.f32.mrf.mxu0
    %v318 = vadd.f32 %v292, %v317
    %v319 = vpop.f32.mrf.mxu0
    %320 = vdwg.mxu0
    %v321 = vtanh.pop %v318
    %322 = vst [vmem:[#allocation11] sm:$0xff] %v321
    // Predicated region
    $region42: #{tpu_custom_call.1} parent=1 // pred_check
      _
    $region43: #{tpu_custom_call.1} parent=1 // pred_check_branch
      %324 = sbr.rel (0) target = $region45
    $region44: #{tpu_custom_call.1} parent=1 // pred_region
      %326 = vsyncadd [#allocation4], 0
      %s328 = sshll.u32 [#allocation11], 4
      %s329 = int_to_ptr.vmem [resolvable:$true] %s328
      %s330 = sshll.u32 %s5, 4
      %s331 = int_to_ptr.hbm [resolvable:$true] %s330
      %333 = dma.vmem_to_hbm [thread:$0]  %s329, 128, %s331, [#allocation4]
    $region45: #{tpu_custom_call.1} parent=1 // pred_fallthru
      _
    // Predicated region
    $region46: #{tpu_custom_call.1} parent=1 // pred_check
      _
    $region47: #{tpu_custom_call.1} parent=1 // pred_check_branch
      %335 = sbr.rel (0) target = $region49
    $region48: #{tpu_custom_call.1} parent=1 // pred_region
      %337 = dma.done [#allocation4], 128
    $region49: #{tpu_custom_call.1} parent=1 // pred_fallthru
      _
    %338 = vsyncpa [#allocation3], 1
    %339 = vsyncpa [#allocation6], 1
    %340 = vsyncpa [#allocation9], 1
    %341 = vsyncpa [#allocation4], 1

</llo_original>
